<compile_context>
chip_gen: v5e
topology: v5e:2x2
jax: 0.10.0
libtpu: 0.0.40
codegen_flags: <defaults>
</compile_context>

<pallas_src>
import jax
import jax.numpy as jnp
from jax.experimental import pallas as pl
from jax.experimental.pallas import tpu as pltpu

IN_FEATURES = 435
PARAM = 32


def _round_up(n, m):
    return ((n + m - 1) // m) * m


def _mlp_kernel(x_ref, w1_ref, b1_ref, w2_ref, b2_ref, o_ref):
    # fc1 + ReLU (inner_activation)
    h1 = jnp.dot(x_ref[...], w1_ref[...], preferred_element_type=jnp.float32)
    h1 = jnp.maximum(h1 + b1_ref[...], 0.0)
    # fc2 + ReLU (end_activation); output is the unpadded 435-wide tile.
    h2 = jnp.dot(h1, w2_ref[...], preferred_element_type=jnp.float32)
    o_ref[...] = jnp.maximum(h2 + b2_ref[...], 0.0).astype(o_ref.dtype)


def _pick_tile_and_vmem():
    """Generation-aware (batch tile, vmem_limit_bytes).

    v5e / v6e (128 MiB physical VMEM): TB=4096, 64 MiB scoped limit
      (working set ~29 MB double-buffered).
    v7x (64 MiB per TC) or unknown:    TB=2048, 32 MiB scoped limit
      (working set ~15 MB double-buffered).
    """
    try:
        info = pltpu.get_tpu_info()
        vmem = getattr(info, "vmem_capacity_bytes", None)
    except Exception:
        vmem = None
    if vmem is not None and vmem >= (96 << 20):
        return 4096, 64 << 20
    return 2048, 32 << 20


def one_layer_model_forward(x, params, *, tb=None, use_bf16_activations=False):
    """x: [B, IN_FEATURES]. params: dict of transposed weights / biases.

    Dropout layers (p=0.0 by default) are identity at inference and omitted.
    If `use_bf16_activations`, the HBM-facing activations (x, out) are bf16
    while matmul accumulation / bias / ReLU stay f32 inside the kernel.
    """
    B, F = x.shape
    assert F == IN_FEATURES
    w1, b1, w2, b2 = params["w1"], params["b1"], params["w2"], params["b2"]

    if tb is None:
        tb, vmem_limit = _pick_tile_and_vmem()
    else:
        vmem_limit = 32 << 20

    # Cap TB so large batches give >= 2 grid steps ("parallel" then actually
    # shards across the two TensorCores on v7x); keep it a multiple of 8.
    tb_cap = max(8, _round_up(pl.cdiv(B, 2), 8))
    TB = max(8, min(tb, tb_cap))
    grid = (pl.cdiv(B, TB),)

    if use_bf16_activations:
        x = x.astype(jnp.bfloat16)
    out_dtype = x.dtype

    in_bytes = jnp.dtype(x.dtype).itemsize
    out_bytes = jnp.dtype(out_dtype).itemsize
    cost = pl.CostEstimate(
        flops=4 * B * F * PARAM,                       # 2*B*F*P (fc1) + 2*B*P*F (fc2)
        transcendentals=0,
        bytes_accessed=B * F * (in_bytes + out_bytes) + 2 * F * PARAM * 4,
    )

    resident = pl.Buffered(1)  # constant index_map -> no double buffering needed

    out = pl.pallas_call(
        _mlp_kernel,
        out_shape=jax.ShapeDtypeStruct((B, F), out_dtype),
        grid=grid,
        in_specs=[
            pl.BlockSpec((TB, F), lambda i: (i, 0)),                            # x: streamed tiles
            pl.BlockSpec((F, PARAM), lambda i: (0, 0), pipeline_mode=resident),  # w1: VMEM-resident
            pl.BlockSpec((1, PARAM), lambda i: (0, 0), pipeline_mode=resident),  # b1
            pl.BlockSpec((PARAM, F), lambda i: (0, 0), pipeline_mode=resident),  # w2
            pl.BlockSpec((1, F), lambda i: (0, 0), pipeline_mode=resident),      # b2
        ],
        out_specs=pl.BlockSpec((TB, F), lambda i: (i, 0)),
        compiler_params=pltpu.CompilerParams(
            dimension_semantics=("parallel",),   # shard batch across TCs (v7x)
            vmem_limit_bytes=vmem_limit,
        ),
        cost_estimate=cost,
    )(x, w1, b1, w2, b2)
    return out


def init_params(key):
    """Deterministic init mimicking nn.Linear (uniform +-1/sqrt(fan_in)).

    Weights are stored already transposed to [in, out]; biases as [1, out].
    """
    def linear(key, fan_in, fan_out):
        kw, kb = jax.random.split(key)
        bound = 1.0 / jnp.sqrt(fan_in)
        w = jax.random.uniform(kw, (fan_in, fan_out), jnp.float32, -bound, bound)
        b = jax.random.uniform(kb, (1, fan_out), jnp.float32, -bound, bound)
        return w, b

    k1, k2 = jax.random.split(key)
    w1, b1 = linear(k1, IN_FEATURES, PARAM)
    w2, b2 = linear(k2, PARAM, IN_FEATURES)
    return {"w1": w1, "b1": b1, "w2": w2, "b2": b2}


def reference_forward(x, p):
    h1 = jnp.maximum(x @ p["w1"] + p["b1"], 0.0)
    return jnp.maximum(h1 @ p["w2"] + p["b2"], 0.0)


if __name__ == "__main__":
    key = jax.random.PRNGKey(0)
    k_params, k_x = jax.random.split(key)

    params = init_params(k_params)
    batch = 8
    x = jax.random.normal(k_x, (batch, IN_FEATURES), jnp.float32)

    out = jax.block_until_ready(one_layer_model_forward(x, params))
    ref = jax.block_until_ready(reference_forward(x, params))

    assert out.shape == (batch, IN_FEATURES)
    assert jnp.allclose(out, ref, atol=1e-5, rtol=1e-5), "mismatch vs reference"

    print("KERNEL_OK")
</pallas_src>

<mosaic_0001>
module attributes {stable_mosaic.version = 11 : i64} {
  func.func @_mlp_kernel(%arg0: i32, %arg1: memref<8x435xf32, #tpu.memory_space<vmem>>, %arg2: memref<435x32xf32, #tpu.memory_space<vmem>>, %arg3: memref<1x32xf32, #tpu.memory_space<vmem>>, %arg4: memref<32x435xf32, #tpu.memory_space<vmem>>, %arg5: memref<1x435xf32, #tpu.memory_space<vmem>>, %arg6: memref<8x435xf32, #tpu.memory_space<vmem>>) attributes {dimension_semantics = [#tpu.dimension_semantics<parallel>], iteration_bounds = array<i64: 1>, scalar_prefetch = 0 : i64, scratch_operands = 0 : i64, tpu.core_type = #tpu.core_type<tc>, window_params = [{transform_indices = @transform_0, window_bounds = array<i64: 8, 435>}, {pipeline_mode = #tpu.pipeline_mode<synchronous>, transform_indices = @transform_1, window_bounds = array<i64: 435, 32>}, {pipeline_mode = #tpu.pipeline_mode<synchronous>, transform_indices = @transform_2, window_bounds = array<i64: 1, 32>}, {pipeline_mode = #tpu.pipeline_mode<synchronous>, transform_indices = @transform_3, window_bounds = array<i64: 32, 435>}, {pipeline_mode = #tpu.pipeline_mode<synchronous>, transform_indices = @transform_4, window_bounds = array<i64: 1, 435>}, {transform_indices = @transform_5, window_bounds = array<i64: 8, 435>}]} {
    %c0 = arith.constant 0 : index
    %c0_0 = arith.constant 0 : index
    %0 = vector.load %arg1[%c0, %c0_0] : memref<8x435xf32, #tpu.memory_space<vmem>>, vector<8x435xf32>
    %c0_1 = arith.constant 0 : index
    %c0_2 = arith.constant 0 : index
    %1 = vector.load %arg2[%c0_1, %c0_2] : memref<435x32xf32, #tpu.memory_space<vmem>>, vector<435x32xf32>
    %cst = arith.constant dense<0.000000e+00> : vector<8x32xf32>
    %2 = tpu.matmul %0, %1, %cst {dimension_numbers = #tpu.dot_dimension_numbers<[1], [0], [0], [1], [0, 0, 1, 1], [], []>} : vector<8x435xf32>, vector<435x32xf32>, vector<8x32xf32> -> vector<8x32xf32>
    %c0_3 = arith.constant 0 : index
    %c0_4 = arith.constant 0 : index
    %3 = vector.load %arg3[%c0_3, %c0_4] : memref<1x32xf32, #tpu.memory_space<vmem>>, vector<1x32xf32>
    %4 = vector.broadcast %3 : vector<1x32xf32> to vector<8x32xf32>
    %5 = arith.addf %2, %4 : vector<8x32xf32>
    %cst_5 = arith.constant 0.000000e+00 : f32
    %6 = vector.broadcast %cst_5 : f32 to vector<8x32xf32>
    %7 = arith.maximumf %5, %6 : vector<8x32xf32>
    %c0_6 = arith.constant 0 : index
    %c0_7 = arith.constant 0 : index
    %8 = vector.load %arg4[%c0_6, %c0_7] : memref<32x435xf32, #tpu.memory_space<vmem>>, vector<32x435xf32>
    %cst_8 = arith.constant dense<0.000000e+00> : vector<8x435xf32>
    %9 = tpu.matmul %7, %8, %cst_8 {dimension_numbers = #tpu.dot_dimension_numbers<[1], [0], [0], [1], [0, 0, 1, 1], [], []>} : vector<8x32xf32>, vector<32x435xf32>, vector<8x435xf32> -> vector<8x435xf32>
    %c0_9 = arith.constant 0 : index
    %c0_10 = arith.constant 0 : index
    %10 = vector.load %arg5[%c0_9, %c0_10] : memref<1x435xf32, #tpu.memory_space<vmem>>, vector<1x435xf32>
    %11 = vector.broadcast %10 : vector<1x435xf32> to vector<8x435xf32>
    %12 = arith.addf %9, %11 : vector<8x435xf32>
    %cst_11 = arith.constant 0.000000e+00 : f32
    %13 = vector.broadcast %cst_11 : f32 to vector<8x435xf32>
    %14 = arith.maximumf %12, %13 : vector<8x435xf32>
    %c0_12 = arith.constant 0 : index
    %c0_13 = arith.constant 0 : index
    %15 = vector.load %arg6[%c0_12, %c0_13] : memref<8x435xf32, #tpu.memory_space<vmem>>, vector<8x435xf32>
    tpu.vector_store %arg6[%c0_12, %c0_13], %14 {strides = array<i32>} : memref<8x435xf32, #tpu.memory_space<vmem>>, vector<8x435xf32>,
    return
  }
  func.func @transform_0(%arg0: i32) -> (i32, i32) {
    %c0_i32 = arith.constant 0 : i32
    %c0_i32_0 = arith.constant 0 : i32
    return %arg0, %c0_i32 : i32, i32
  }
  func.func @transform_1(%arg0: i32) -> (i32, i32) {
    %c0_i32 = arith.constant 0 : i32
    %c0_i32_0 = arith.constant 0 : i32
    %c0_i32_1 = arith.constant 0 : i32
    return %c0_i32, %c0_i32_0 : i32, i32
  }
  func.func @transform_2(%arg0: i32) -> (i32, i32) {
    %c0_i32 = arith.constant 0 : i32
    %c0_i32_0 = arith.constant 0 : i32
    %c0_i32_1 = arith.constant 0 : i32
    return %c0_i32, %c0_i32_0 : i32, i32
  }
  func.func @transform_3(%arg0: i32) -> (i32, i32) {
    %c0_i32 = arith.constant 0 : i32
    %c0_i32_0 = arith.constant 0 : i32
    %c0_i32_1 = arith.constant 0 : i32
    return %c0_i32, %c0_i32_0 : i32, i32
  }
  func.func @transform_4(%arg0: i32) -> (i32, i32) {
    %c0_i32 = arith.constant 0 : i32
    %c0_i32_0 = arith.constant 0 : i32
    %c0_i32_1 = arith.constant 0 : i32
    return %c0_i32, %c0_i32_0 : i32, i32
  }
  func.func @transform_5(%arg0: i32) -> (i32, i32) {
    %c0_i32 = arith.constant 0 : i32
    %c0_i32_0 = arith.constant 0 : i32
    return %arg0, %c0_i32 : i32, i32
  }
}

</mosaic_0001>

<llo_original>
// kernel: tpu_custom_call.1
$region0: #{tpu_custom_call.1}
  #allocation0 [shape = 'u32[]', space=smem, size = 0x4, offset = 0x4, fixed_abs, tag = 'smem constant byte address 0x4 - core index']
  #allocation1 [shape = 'u32[72,128]{1,0:T(1,128)}', space=vmem, size = 0x9000, scoped, tag = 'internal scratch']
  %s0 = inlined_call_operand.vmem [shape: f32[8,435], index: 0, kind: input, shape index: {}]
  %s1 = inlined_call_operand.vmem [shape: f32[435,32], index: 1, kind: input, shape index: {}]
  %s2 = inlined_call_operand.vmem [shape: f32[1,32], index: 2, kind: input, shape index: {}]
  %s3 = inlined_call_operand.vmem [shape: f32[32,435], index: 3, kind: input, shape index: {}]
  %s4 = inlined_call_operand.vmem [shape: f32[1,435], index: 4, kind: input, shape index: {}]
  %s5 = inlined_call_operand.hbm [shape: f32[8,435], index: 5, kind: output, shape index: {}]
  %s6 = sld [smem:[#allocation0]]
  $region30: #{tpu_custom_call.1} parent=0
    _
  %s8 = ssub.s32 1, %s6
  %s9 = scalar_select 0, %s8, %s6
  $region1: #{tpu_custom_call.1} parent=0
    #allocation2 [shape = 'u8[16384]{0}', space=vmem, size = 0x4000, scoped, tag = 'output window, operand 0, single buffered']
    #allocation3 [shape = 's32[1]{0}', space=sflag, size = 0x4, scoped, tag = 'scoped memory for tpu_custom_call.1']
    %10 = vsyncpa [#allocation3], 0
    // Predicated region
    $region2: #{tpu_custom_call.1} parent=1 // pred_check
      _
    $region3: #{tpu_custom_call.1} parent=1 // pred_check_branch
      %12 = sbr.rel (0) target = $region5
    $region4: #{tpu_custom_call.1} parent=1 // pred_region
      _
    $region5: #{tpu_custom_call.1} parent=1 // pred_fallthru
      _
    // Predicated region
    $region6: #{tpu_custom_call.1} parent=1 // pred_check
      _
    $region7: #{tpu_custom_call.1} parent=1 // pred_check_branch
      %14 = sbr.rel (0) target = $region9
    $region8: #{tpu_custom_call.1} parent=1 // pred_region
      _
    $region9: #{tpu_custom_call.1} parent=1 // pred_fallthru
      _
    // Predicated region
    $region10: #{tpu_custom_call.1} parent=1 // pred_check
      _
    $region11: #{tpu_custom_call.1} parent=1 // pred_check_branch
      %16 = sbr.rel (0) target = $region13
    $region12: #{tpu_custom_call.1} parent=1 // pred_region
      _
    $region13: #{tpu_custom_call.1} parent=1 // pred_fallthru
      _
    // Predicated region
    $region14: #{tpu_custom_call.1} parent=1 // pred_check
      _
    $region15: #{tpu_custom_call.1} parent=1 // pred_check_branch
      %18 = sbr.rel (0) target = $region17
    $region16: #{tpu_custom_call.1} parent=1 // pred_region
      _
    $region17: #{tpu_custom_call.1} parent=1 // pred_fallthru
      _
    // Predicated region
    $region18: #{tpu_custom_call.1} parent=1 // pred_check
      _
    $region19: #{tpu_custom_call.1} parent=1 // pred_check_branch
      %20 = sbr.rel (0) target = $region21
    $region20: #{tpu_custom_call.1} parent=1 // pred_region
      _
    $region21: #{tpu_custom_call.1} parent=1 // pred_fallthru
      _
    %v21 = vld [vmem:[%s0] sm:$0xff]
    %v22 = vld [vmem:[%s0 + $0x8] sm:$0xff]
    %v23 = vld [vmem:[%s0 + $0x10] sm:$0xff]
    %v24 = vld [vmem:[%s0 + $0x18] sm:$0xff]
    %v25 = vld [vmem:[%s1] sm:$0xff]
    %v26 = vld [vmem:[%s1 + $0x8] sm:$0xff]
    %v27 = vld [vmem:[%s1 + $0x10] sm:$0xff]
    %v28 = vld [vmem:[%s1 + $0x18] sm:$0xff]
    %v29 = vld [vmem:[%s1 + $0x20] sm:$0xff]
    %v30 = vld [vmem:[%s1 + $0x28] sm:$0xff]
    %v31 = vld [vmem:[%s1 + $0x30] sm:$0xff]
    %v32 = vld [vmem:[%s1 + $0x38] sm:$0xff]
    %v33 = vld [vmem:[%s1 + $0x40] sm:$0xff]
    %v34 = vld [vmem:[%s1 + $0x48] sm:$0xff]
    %v35 = vld [vmem:[%s1 + $0x50] sm:$0xff]
    %v36 = vld [vmem:[%s1 + $0x58] sm:$0xff]
    %v37 = vld [vmem:[%s1 + $0x60] sm:$0xff]
    %v38 = vld [vmem:[%s1 + $0x68] sm:$0xff]
    %v39 = vld [vmem:[%s1 + $0x70] sm:$0xff]
    %v40 = vld [vmem:[%s1 + $0x78] sm:$0xff]
    %v41 = vld [vmem:[%s1 + $0x80] sm:$0xff]
    %v42 = vld [vmem:[%s1 + $0x88] sm:$0xff]
    %v43 = vld [vmem:[%s1 + $0x90] sm:$0xff]
    %v44 = vld [vmem:[%s1 + $0x98] sm:$0xff]
    %v45 = vld [vmem:[%s1 + $0xa0] sm:$0xff]
    %v46 = vld [vmem:[%s1 + $0xa8] sm:$0xff]
    %v47 = vld [vmem:[%s1 + $0xb0] sm:$0xff]
    %v48 = vld [vmem:[%s1 + $0xb8] sm:$0xff]
    %v49 = vld [vmem:[%s1 + $0xc0] sm:$0xff]
    %v50 = vld [vmem:[%s1 + $0xc8] sm:$0xff]
    %v51 = vld [vmem:[%s1 + $0xd0] sm:$0xff]
    %v52 = vld [vmem:[%s1 + $0xd8] sm:$0xff]
    %v53 = vld [vmem:[%s1 + $0xe0] sm:$0xff]
    %v54 = vld [vmem:[%s1 + $0xe8] sm:$0xff]
    %v55 = vld [vmem:[%s1 + $0xf0] sm:$0xff]
    %v56 = vld [vmem:[%s1 + $0xf8] sm:$0xff]
    %v57 = vld [vmem:[%s1 + $0x100] sm:$0xff]
    %v58 = vld [vmem:[%s1 + $0x108] sm:$0xff]
    %v59 = vld [vmem:[%s1 + $0x110] sm:$0xff]
    %v60 = vld [vmem:[%s1 + $0x118] sm:$0xff]
    %v61 = vld [vmem:[%s1 + $0x120] sm:$0xff]
    %v62 = vld [vmem:[%s1 + $0x128] sm:$0xff]
    %v63 = vld [vmem:[%s1 + $0x130] sm:$0xff]
    %v64 = vld [vmem:[%s1 + $0x138] sm:$0xff]
    %v65 = vld [vmem:[%s1 + $0x140] sm:$0xff]
    %v66 = vld [vmem:[%s1 + $0x148] sm:$0xff]
    %v67 = vld [vmem:[%s1 + $0x150] sm:$0xff]
    %v68 = vld [vmem:[%s1 + $0x158] sm:$0xff]
    %v69 = vld [vmem:[%s1 + $0x160] sm:$0xff]
    %v70 = vld [vmem:[%s1 + $0x168] sm:$0xff]
    %v71 = vld [vmem:[%s1 + $0x170] sm:$0xff]
    %v72 = vld [vmem:[%s1 + $0x178] sm:$0xff]
    %v73 = vld [vmem:[%s1 + $0x180] sm:$0xff]
    %v74 = vld [vmem:[%s1 + $0x188] sm:$0xff]
    %v75 = vld [vmem:[%s1 + $0x190] sm:$0xff]
    %v76 = vld [vmem:[%s1 + $0x198] sm:$0xff]
    %v77 = vld [vmem:[%s1 + $0x1a0] sm:$0xff]
    %v78 = vld [vmem:[%s1 + $0x1a8] sm:$0xff]
    %v79 = vld [vmem:[%s1 + $0x1b0] sm:$0x7]
    %v80 = vld [vmem:[%s2] sm:$0x1]
    %v82 = vperm.slane %v80, 0
    %vm84 = vcmask 416768
    %v86 = vsel %vm84, %v24, 0
    %vm88 = vcmask 1042432
    %v90 = vsel %vm88, %v79, 0
    %92 = vmatpush.msra.mxu0 %v40
    %93 = vmatpush.msra.mxu0 %v39
    %94 = vmatpush.msra.mxu0 %v38
    %95 = vmatpush.msra.mxu0 %v37
    %96 = vmatpush.msra.mxu0 %v36
    %97 = vmatpush.msra.mxu0 %v35
    %98 = vmatpush.msra.mxu0 %v34
    %99 = vmatpush.msra.mxu0 %v33
    %100 = vmatpush.msra.mxu0 %v32
    %101 = vmatpush.msra.mxu0 %v31
    %102 = vmatpush.msra.mxu0 %v30
    %103 = vmatpush.msra.mxu0 %v29
    %104 = vmatpush.msra.mxu0 %v28
    %105 = vmatpush.msra.mxu0 %v27
    %106 = vmatpush.msra.mxu0 %v26
    %107 = vmatpush.msra.mxu0 %v25
    %108 = vmatmul.f32.gmra.mxu0 %v21
    %v109 = vpop.f32.mrf.mxu0
    %v110 = vadd.f32 %v82, %v109
    %111 = vdwg.mxu0
    %112 = vmatpush.msra.mxu0 %v56
    %113 = vmatpush.msra.mxu0 %v55
    %114 = vmatpush.msra.mxu0 %v54
    %115 = vmatpush.msra.mxu0 %v53
    %116 = vmatpush.msra.mxu0 %v52
    %117 = vmatpush.msra.mxu0 %v51
    %118 = vmatpush.msra.mxu0 %v50
    %119 = vmatpush.msra.mxu0 %v49
    %120 = vmatpush.msra.mxu0 %v48
    %121 = vmatpush.msra.mxu0 %v47
    %122 = vmatpush.msra.mxu0 %v46
    %123 = vmatpush.msra.mxu0 %v45
    %124 = vmatpush.msra.mxu0 %v44
    %125 = vmatpush.msra.mxu0 %v43
    %126 = vmatpush.msra.mxu0 %v42
    %127 = vmatpush.msra.mxu0 %v41
    %128 = vmatmul.f32.gmra.mxu0 %v22
    %v129 = vpop.f32.mrf.mxu0
    %v130 = vadd.f32 %v110, %v129
    %131 = vdwg.mxu0
    %132 = vmatpush.msra.mxu0 %v72
    %133 = vmatpush.msra.mxu0 %v71
    %134 = vmatpush.msra.mxu0 %v70
    %135 = vmatpush.msra.mxu0 %v69
    %136 = vmatpush.msra.mxu0 %v68
    %137 = vmatpush.msra.mxu0 %v67
    %138 = vmatpush.msra.mxu0 %v66
    %139 = vmatpush.msra.mxu0 %v65
    %140 = vmatpush.msra.mxu0 %v64
    %141 = vmatpush.msra.mxu0 %v63
    %142 = vmatpush.msra.mxu0 %v62
    %143 = vmatpush.msra.mxu0 %v61
    %144 = vmatpush.msra.mxu0 %v60
    %145 = vmatpush.msra.mxu0 %v59
    %146 = vmatpush.msra.mxu0 %v58
    %147 = vmatpush.msra.mxu0 %v57
    %148 = vmatmul.f32.gmra.mxu0 %v23
    %v149 = vpop.f32.mrf.mxu0
    %v150 = vadd.f32 %v130, %v149
    %151 = vdwg.mxu0
    %152 = vmatpush.msra.mxu0 0.0
    %153 = vmatpush.msra.mxu0 0.0
    %154 = vmatpush.msra.mxu0 0.0
    %155 = vmatpush.msra.mxu0 0.0
    %156 = vmatpush.msra.mxu0 0.0
    %157 = vmatpush.msra.mxu0 0.0
    %158 = vmatpush.msra.mxu0 0.0
    %159 = vmatpush.msra.mxu0 0.0
    %160 = vmatpush.msra.mxu0 0.0
    %161 = vmatpush.msra.mxu0 %v90
    %162 = vmatpush.msra.mxu0 %v78
    %163 = vmatpush.msra.mxu0 %v77
    %164 = vmatpush.msra.mxu0 %v76
    %165 = vmatpush.msra.mxu0 %v75
    %166 = vmatpush.msra.mxu0 %v74
    %167 = vmatpush.msra.mxu0 %v73
    %168 = vmatmul.f32.gmra.mxu0 %v86
    %v169 = vpop.f32.mrf.mxu0
    %v170 = vadd.f32 %v150, %v169
    %171 = vdwg.mxu0
    %v172 = vmax.f32 %v170, 0.0
    %v173 = vld [vmem:[%s3] sm:$0xff]
    %v174 = vld [vmem:[%s3 + $0x8] sm:$0xff]
    %v175 = vld [vmem:[%s3 + $0x10] sm:$0xff]
    %v176 = vld [vmem:[%s3 + $0x18] sm:$0xff]
    %v177 = vld [vmem:[%s3 + $0x20] sm:$0xff]
    %v178 = vld [vmem:[%s3 + $0x28] sm:$0xff]
    %v179 = vld [vmem:[%s3 + $0x30] sm:$0xff]
    %v180 = vld [vmem:[%s3 + $0x38] sm:$0xff]
    %v181 = vld [vmem:[%s3 + $0x40] sm:$0xff]
    %v182 = vld [vmem:[%s3 + $0x48] sm:$0xff]
    %v183 = vld [vmem:[%s3 + $0x50] sm:$0xff]
    %v184 = vld [vmem:[%s3 + $0x58] sm:$0xff]
    %v185 = vld [vmem:[%s3 + $0x60] sm:$0xff]
    %v186 = vld [vmem:[%s3 + $0x68] sm:$0xff]
    %v187 = vld [vmem:[%s3 + $0x70] sm:$0xff]
    %v188 = vld [vmem:[%s3 + $0x78] sm:$0xff]
    %v189 = vld [vmem:[%s4] sm:$0xf]
    %v191 = vperm.slane %v189, 0
    %v192 = vperm.slane %v189, 1
    %v193 = vperm.slane %v189, 2
    %v194 = vperm.slane %v189, 3
    %vm199 = vcmask 261120
    %v201 = vsel %vm199, %v172, 0
    %203 = vmatpush.msra.mxu0 0.0
    %204 = vmatpush.msra.mxu0 0.0
    %205 = vmatpush.msra.mxu0 0.0
    %206 = vmatpush.msra.mxu0 0.0
    %207 = vmatpush.msra.mxu0 0.0
    %208 = vmatpush.msra.mxu0 0.0
    %209 = vmatpush.msra.mxu0 0.0
    %210 = vmatpush.msra.mxu0 0.0
    %211 = vmatpush.msra.mxu0 0.0
    %212 = vmatpush.msra.mxu0 0.0
    %213 = vmatpush.msra.mxu0 0.0
    %214 = vmatpush.msra.mxu0 0.0
    %215 = vmatpush.msra.mxu0 %v185
    %216 = vmatpush.msra.mxu0 %v181
    %217 = vmatpush.msra.mxu0 %v177
    %218 = vmatpush.msra.mxu0 %v173
    %219 = vmatmul.f32.gmra.mxu0 %v201
    %v220 = vpop.f32.mrf.mxu0
    %v221 = vadd.f32 %v191, %v220
    %222 = vdwg.mxu0
    %223 = vmatpush.msra.mxu0 0.0
    %224 = vmatpush.msra.mxu0 0.0
    %225 = vmatpush.msra.mxu0 0.0
    %226 = vmatpush.msra.mxu0 0.0
    %227 = vmatpush.msra.mxu0 0.0
    %228 = vmatpush.msra.mxu0 0.0
    %229 = vmatpush.msra.mxu0 0.0
    %230 = vmatpush.msra.mxu0 0.0
    %231 = vmatpush.msra.mxu0 0.0
    %232 = vmatpush.msra.mxu0 0.0
    %233 = vmatpush.msra.mxu0 0.0
    %234 = vmatpush.msra.mxu0 0.0
    %235 = vmatpush.msra.mxu0 %v186
    %236 = vmatpush.msra.mxu0 %v182
    %237 = vmatpush.msra.mxu0 %v178
    %238 = vmatpush.msra.mxu0 %v174
    %239 = vmatmul.f32.gmra.mxu0 %v201
    %v240 = vpop.f32.mrf.mxu0
    %v241 = vadd.f32 %v192, %v240
    %242 = vdwg.mxu0
    %243 = vmatpush.msra.mxu0 0.0
    %244 = vmatpush.msra.mxu0 0.0
    %245 = vmatpush.msra.mxu0 0.0
    %246 = vmatpush.msra.mxu0 0.0
    %247 = vmatpush.msra.mxu0 0.0
    %248 = vmatpush.msra.mxu0 0.0
    %249 = vmatpush.msra.mxu0 0.0
    %250 = vmatpush.msra.mxu0 0.0
    %251 = vmatpush.msra.mxu0 0.0
    %252 = vmatpush.msra.mxu0 0.0
    %253 = vmatpush.msra.mxu0 0.0
    %254 = vmatpush.msra.mxu0 0.0
    %255 = vmatpush.msra.mxu0 %v187
    %256 = vmatpush.msra.mxu0 %v183
    %257 = vmatpush.msra.mxu0 %v179
    %258 = vmatpush.msra.mxu0 %v175
    %259 = vmatmul.f32.gmra.mxu0 %v201
    %v260 = vpop.f32.mrf.mxu0
    %v261 = vadd.f32 %v193, %v260
    %262 = vdwg.mxu0
    %263 = vmatpush.msra.mxu0 0.0
    %264 = vmatpush.msra.mxu0 0.0
    %265 = vmatpush.msra.mxu0 0.0
    %266 = vmatpush.msra.mxu0 0.0
    %267 = vmatpush.msra.mxu0 0.0
    %268 = vmatpush.msra.mxu0 0.0
    %269 = vmatpush.msra.mxu0 0.0
    %270 = vmatpush.msra.mxu0 0.0
    %271 = vmatpush.msra.mxu0 0.0
    %272 = vmatpush.msra.mxu0 0.0
    %273 = vmatpush.msra.mxu0 0.0
    %274 = vmatpush.msra.mxu0 0.0
    %275 = vmatpush.msra.mxu0 %v188
    %276 = vmatpush.msra.mxu0 %v184
    %277 = vmatpush.msra.mxu0 %v180
    %278 = vmatpush.msra.mxu0 %v176
    %279 = vmatmul.f32.gmra.mxu0 %v201
    %v280 = vpop.f32.mrf.mxu0
    %v281 = vadd.f32 %v194, %v280
    %282 = vdwg.mxu0
    %v283 = vmax.f32 %v221, 0.0
    %v284 = vmax.f32 %v241, 0.0
    %v285 = vmax.f32 %v261, 0.0
    %v286 = vmax.f32 %v281, 0.0
    %287 = vst [vmem:[#allocation2] sm:$0xff] %v283
    %288 = vst [vmem:[#allocation2 + $0x8] sm:$0xff] %v284
    %289 = vst [vmem:[#allocation2 + $0x10] sm:$0xff] %v285
    %290 = vst.msk [vmem:[#allocation2 + $0x18] sm:$0xff] %vm84, %v286
    // Predicated region
    $region22: #{tpu_custom_call.1} parent=1 // pred_check
      _
    $region23: #{tpu_custom_call.1} parent=1 // pred_check_branch
      %292 = sbr.rel (0) target = $region25
    $region24: #{tpu_custom_call.1} parent=1 // pred_region
      %294 = vsyncadd [#allocation3], 0
      %s296 = sshll.u32 [#allocation2], 4
      %s297 = int_to_ptr.vmem [resolvable:$true] %s296
      %s298 = sshll.u32 %s5, 4
      %s299 = int_to_ptr.hbm [resolvable:$true] %s298
      %301 = dma.vmem_to_hbm [thread:$0]  %s297, 512, %s299, [#allocation3]
    $region25: #{tpu_custom_call.1} parent=1 // pred_fallthru
      _
    // Predicated region
    $region26: #{tpu_custom_call.1} parent=1 // pred_check
      _
    $region27: #{tpu_custom_call.1} parent=1 // pred_check_branch
      %303 = sbr.rel (0) target = $region29
    $region28: #{tpu_custom_call.1} parent=1 // pred_region
      %305 = dma.done [#allocation3], 512
    $region29: #{tpu_custom_call.1} parent=1 // pred_fallthru
      _
    %306 = vsyncpa [#allocation3], 1

</llo_original>
